<compile_context>
chip_gen: v6e
topology: v6e:2x2x1
jax: 0.10.0
libtpu: 0.0.40
codegen_flags: <defaults>
</compile_context>

<pallas_src>
import functools

import jax
import jax.numpy as jnp
from jax import lax
from jax.experimental import pallas as pl
from jax.experimental.pallas import tpu as pltpu


# ---------------------------------------------------------------------------
# Helpers
# ---------------------------------------------------------------------------
def _pick_slab(tc):
    """Largest channel slab (multiple of 8 sublanes) that divides tc, or 0."""
    for cand in (64, 32, 16, 8):
        if tc > cand and tc % cand == 0:
            return cand
    return 0


def _f32_temp_bytes(tb, tc, thw):
    """Worst-case live f32 temporary inside the kernel for one block."""
    slab = _pick_slab(tc)
    rows = slab if slab else tc
    return tb * (rows + 1) * thw * 4


def _vmem_and_target():
    """(physical VMEM per core, per-block byte target) for this chip."""
    vmem_cap = 128 * 1024 * 1024
    try:
        info = pltpu.get_tpu_info()
        vmem_cap = int(getattr(info, "vmem_capacity_bytes", vmem_cap))
    except Exception:
        pass
    if vmem_cap <= 64 * 1024 * 1024:
        # v7x-class: 3.2 TB/s HBM -> bigger blocks to amortize ~0.35us/step.
        target = 12 * 1024 * 1024
    else:
        # v5e/v6e: 8 MiB blocks already put per-step overhead < 5%.
        target = 8 * 1024 * 1024
    return vmem_cap, target


# ---------------------------------------------------------------------------
# Kernel body
# ---------------------------------------------------------------------------
def _node_att_kernel(x_ref, o_ref, *scratch, k_axis, normalize):
    """Streamed channel sum-of-squares (+ optional spatial-max normalize).

    x_ref  : (TB, TC, THW) input block.
    o_ref  : (TB, 1,  THW) output block, resident across the channel grid axis.
    scratch: optional (TB, 1, THW) f32 accumulator; when absent the (f32)
             output block itself is the accumulator.
    """
    acc_ref = scratch[0] if scratch else o_ref
    k = pl.program_id(k_axis)

    @pl.when(k == 0)
    def _init():
        acc_ref[...] = jnp.zeros_like(acc_ref)

    TB, TC, THW = x_ref.shape
    slab = _pick_slab(TC)

    if slab:
        # Channel-slab loop keeps the live f32 temporary at `slab` rows
        # instead of a full-block f32 copy of the input tile.
        trips = TC // slab

        def body(i, acc):
            start = pl.multiple_of(i * slab, slab)
            xs = x_ref[:, pl.ds(start, slab), :].astype(jnp.float32)
            return acc + jnp.sum(xs * xs, axis=1, keepdims=True)

        part = lax.fori_loop(0, trips, body,
                             jnp.zeros((TB, 1, THW), jnp.float32),
                             unroll=(trips <= 8))
    else:
        x = x_ref[...].astype(jnp.float32)
        part = jnp.sum(x * x, axis=1, keepdims=True)

    acc_ref[...] += part.astype(acc_ref.dtype)

    @pl.when(k == pl.num_programs(k_axis) - 1)
    def _finalize():
        s = acc_ref[...].astype(jnp.float32)
        if normalize:
            # Per-batch-row spatial max == AdaptiveMaxPool2d(1).  All-zero rows
            # yield inf/nan exactly like the PyTorch reference (0/0).
            max_val = jnp.max(s, axis=-1, keepdims=True)          # (TB, 1, 1)
            s = s * pl.reciprocal(max_val)                        # exact recip
        o_ref[...] = s.astype(o_ref.dtype)


# ---------------------------------------------------------------------------
# Wrapper
# ---------------------------------------------------------------------------
def node_att(xf, *, target_block_bytes=None):
    """Pallas implementation of node_att.forward: (N, C, H, W) -> (N, 1, H, W)."""
    N, C, H, W = xf.shape
    HW = H * W
    itemsize = jnp.dtype(xf.dtype).itemsize
    x = xf.reshape(N, C, HW)                       # lane-dense layout (free)

    _, default_target = _vmem_and_target()
    if target_block_bytes is None:
        target_block_bytes = default_target
    target_block_bytes = max(int(target_block_bytes), 512)

    # Working-set budget (double-buffered input + output + acc + f32 temp).
    # 40 MiB leaves >= 20 MiB headroom even on v7x's 64 MiB VMEM; scale down
    # if the caller asked for very small blocks.
    workset_budget = min(40 * 1024 * 1024, 6 * target_block_bytes)

    # dtype sublane packing: f32 -> 8, bf16 -> 16, int8/fp8 -> 32.
    sub = 8 * max(1, 4 // itemsize)
    bytes_per_row = C * HW * itemsize
    use_scratch = jnp.dtype(xf.dtype) != jnp.dtype(jnp.float32)

    def _main_cost(tb, tc):
        in_blk = tb * tc * HW * itemsize
        out_blk = tb * HW * itemsize
        acc = tb * HW * 4 if use_scratch else 0
        return 2 * in_blk + 2 * out_blk + acc + _f32_temp_bytes(tb, tc, HW)

    cost_est = pl.CostEstimate(
        flops=2 * N * C * HW,
        transcendentals=0,
        bytes_accessed=(N * C * HW + N * HW) * itemsize,
    )

    # --- channel tile --------------------------------------------------------
    TC = C
    if bytes_per_row > target_block_bytes and C % sub == 0:
        TC = sub
        for cand in range(C, sub - 1, -sub):
            if C % cand == 0 and cand * HW * itemsize <= target_block_bytes:
                TC = cand
                break
    tc_min = sub if C % sub == 0 else C

    if _main_cost(1, tc_min) <= workset_budget:
        # =====================================================================
        # Main path: full-HW blocks, grid = (batch, channel-reduction).
        # =====================================================================
        min_parallel = min(N, 2)          # v7x: 2 TCs want >= 2 parallel steps
        TB = 1
        for cand in range(N, 0, -1):
            if N % cand:
                continue
            if N // cand < min_parallel:
                continue
            if cand * TC * HW * itemsize > target_block_bytes:
                continue
            if _main_cost(cand, TC) > workset_budget:
                continue
            TB = cand
            break
        NB = N // TB
        K = C // TC

        # Aim for >= 4 total grid steps so the pipeline overlaps, as long as
        # blocks do not shrink below ~half the target (or a quarter of the
        # whole input for tiny problems).
        step_floor = min(target_block_bytes // 2, max(N * bytes_per_row // 4, 1))
        while NB * K < 4 and TB > 1:
            nxt = next((d for d in range(TB - 1, 0, -1) if N % d == 0), None)
            if nxt is None or nxt * TC * HW * itemsize < step_floor:
                break
            TB = nxt
            NB = N // TB

        kernel = functools.partial(_node_att_kernel, k_axis=1, normalize=True)
        scratch = [pltpu.VMEM((TB, 1, HW), jnp.float32)] if use_scratch else []

        vmem_req = _main_cost(TB, TC)
        vmem_limit = int(min(max(vmem_req + 4 * 1024 * 1024, 16 * 1024 * 1024),
                             48 * 1024 * 1024))

        out = pl.pallas_call(
            kernel,
            out_shape=jax.ShapeDtypeStruct((N, 1, HW), xf.dtype),
            grid_spec=pltpu.PrefetchScalarGridSpec(
                num_scalar_prefetch=0,
                grid=(NB, K),                                 # reduction last
                in_specs=[pl.BlockSpec((TB, TC, HW), lambda b, k: (b, k, 0))],
                out_specs=pl.BlockSpec((TB, 1, HW), lambda b, k: (b, 0, 0)),
                scratch_shapes=scratch,
            ),
            compiler_params=pltpu.CompilerParams(
                dimension_semantics=("parallel", "arbitrary"),
                vmem_limit_bytes=vmem_limit,
            ),
            cost_estimate=cost_est,
        )(x)
        return out.reshape(N, 1, H, W)

    # =========================================================================
    # Fallback: lane (HW) tiling, two passes.  Triggered when even a
    # single-row, minimal-channel block cannot fit the working-set budget
    # (unsplittable C and/or very large spatial maps).
    #   Pass 1 (Pallas): channel sum-of-squares tiled over batch x HW x channel
    #                    into an f32 (N, 1, HW) buffer (no normalization).
    #   Pass 2 (XLA):    per-image spatial max + divide on the tiny sums array
    #                    (1/C of the original traffic).
    # =========================================================================
    TCf = C
    if C * 128 * itemsize > target_block_bytes and C % sub == 0:
        TCf = sub
        for cand in range(C, sub - 1, -sub):
            if C % cand == 0 and cand * 128 * itemsize <= target_block_bytes:
                TCf = cand
                break

    def _fb_cost(thw_):
        in_blk = TCf * thw_ * itemsize
        out_blk = thw_ * 4
        return 2 * in_blk + 2 * out_blk + _f32_temp_bytes(1, TCf, thw_)

    hw_cap = pl.cdiv(HW, 128) * 128
    thw_by_target = (target_block_bytes // max(TCf * itemsize, 1)) // 128 * 128
    THW = max(128, min(thw_by_target, hw_cap))
    while THW > 128 and _fb_cost(THW) > workset_budget:
        THW -= 128

    n_hw = pl.cdiv(HW, THW)
    Kf = C // TCf

    kernel = functools.partial(_node_att_kernel, k_axis=2, normalize=False)
    vmem_req = _fb_cost(THW)
    vmem_limit = int(min(max(vmem_req + 4 * 1024 * 1024, 16 * 1024 * 1024),
                         48 * 1024 * 1024))

    sums = pl.pallas_call(
        kernel,
        out_shape=jax.ShapeDtypeStruct((N, 1, HW), jnp.float32),
        grid_spec=pltpu.PrefetchScalarGridSpec(
            num_scalar_prefetch=0,
            grid=(N, n_hw, Kf),                               # reduction last
            in_specs=[pl.BlockSpec((1, TCf, THW), lambda b, h, k: (b, k, h))],
            out_specs=pl.BlockSpec((1, 1, THW), lambda b, h, k: (b, 0, h)),
        ),
        compiler_params=pltpu.CompilerParams(
            dimension_semantics=("parallel", "parallel", "arbitrary"),
            vmem_limit_bytes=vmem_limit,
        ),
        cost_estimate=cost_est,
    )(x)

    out = sums / jnp.max(sums, axis=-1, keepdims=True)
    return out.astype(xf.dtype).reshape(N, 1, H, W)


# ---------------------------------------------------------------------------
# Pure-JAX reference
# ---------------------------------------------------------------------------
def _reference(x):
    xff = x * x
    s = jnp.sum(xff, axis=1, keepdims=True)
    return s / jnp.max(s, axis=(2, 3), keepdims=True)


if __name__ == "__main__":
    key = jax.random.PRNGKey(0)

    # 1) Small NCHW input consistent with node_att.forward (single channel
    #    step, f32 output-resident accumulator, 2 parallel batch steps).
    x = jax.random.normal(key, (2, 4, 16, 16), dtype=jnp.float32)
    out = jax.block_until_ready(node_att(x))
    ref = _reference(x)
    assert out.shape == (2, 1, 16, 16)
    assert jnp.allclose(out, ref, atol=1e-5, rtol=1e-5)

    # 2) Tiny block budget: exercises the multi-step batch axis and the
    #    channel-reduction (accumulator) grid axis.
    x2 = jax.random.normal(jax.random.PRNGKey(0), (4, 16, 8, 16), dtype=jnp.float32)
    out2 = jax.block_until_ready(node_att(x2, target_block_bytes=4096))
    ref2 = _reference(x2)
    assert out2.shape == (4, 1, 8, 16)
    assert jnp.allclose(out2, ref2, atol=1e-5, rtol=1e-5)

    # 3) bf16 input: exercises the f32 scratch accumulator and the in-kernel
    #    channel-slab fori_loop.
    x3 = jax.random.normal(jax.random.PRNGKey(0), (2, 32, 16, 16), dtype=jnp.bfloat16)
    out3 = jax.block_until_ready(node_att(x3, target_block_bytes=8192))
    ref3 = _reference(x3.astype(jnp.float32))
    assert out3.shape == (2, 1, 16, 16)
    assert jnp.allclose(out3.astype(jnp.float32), ref3, atol=2e-2, rtol=2e-2)

    # 4) Unsplittable channel count + tiny budget: exercises the lane (HW)
    #    tiling fallback (two-pass normalization).
    x4 = jax.random.normal(jax.random.PRNGKey(0), (2, 3, 16, 24), dtype=jnp.float32)
    out4 = jax.block_until_ready(node_att(x4, target_block_bytes=1024))
    ref4 = _reference(x4)
    assert out4.shape == (2, 1, 16, 24)
    assert jnp.allclose(out4, ref4, atol=1e-5, rtol=1e-5)

    print("KERNEL_OK")
</pallas_src>

<mosaic_0001>
module attributes {stable_mosaic.version = 11 : i64} {
  func.func @_node_att_kernel(%arg0: i32, %arg1: i32, %arg2: memref<1x4x256xf32, #tpu.memory_space<vmem>>, %arg3: memref<1x1x256xf32, #tpu.memory_space<vmem>>) attributes {dimension_semantics = [#tpu.dimension_semantics<parallel>, #tpu.dimension_semantics<arbitrary>], iteration_bounds = array<i64: 2, 1>, scalar_prefetch = 0 : i64, scratch_operands = 0 : i64, tpu.core_type = #tpu.core_type<tc>, window_params = [{transform_indices = @transform_0, window_bounds = array<i64: 1, 4, 256>}, {transform_indices = @transform_1, window_bounds = array<i64: 1, 1, 256>}]} {
    %c0_i32 = arith.constant 0 : i32
    %0 = arith.cmpi eq, %arg1, %c0_i32 : i32
    %1 = arith.extui %0 : i1 to i32
    %c0_i32_0 = arith.constant 0 : i32
    %2 = arith.cmpi ne, %1, %c0_i32_0 : i32
    scf.if %2 {
      %cst_11 = arith.constant 0.000000e+00 : f32
      %13 = vector.broadcast %cst_11 : f32 to vector<1x1x256xf32>
      %c0_12 = arith.constant 0 : index
      %c0_13 = arith.constant 0 : index
      %c0_14 = arith.constant 0 : index
      %14 = vector.load %arg3[%c0_12, %c0_13, %c0_14] : memref<1x1x256xf32, #tpu.memory_space<vmem>>, vector<1x1x256xf32>
      tpu.vector_store %arg3[%c0_12, %c0_13, %c0_14], %13 {strides = array<i32>} : memref<1x1x256xf32, #tpu.memory_space<vmem>>, vector<1x1x256xf32>,
    } else {
    }
    %c0 = arith.constant 0 : index
    %c0_1 = arith.constant 0 : index
    %c0_2 = arith.constant 0 : index
    %3 = vector.load %arg2[%c0, %c0_1, %c0_2] : memref<1x4x256xf32, #tpu.memory_space<vmem>>, vector<1x4x256xf32>
    %4 = arith.mulf %3, %3 : vector<1x4x256xf32>
    %cst = arith.constant dense<0.000000e+00> : vector<1x256xf32>
    %5 = vector.multi_reduction <add>, %4, %cst [1] : vector<1x4x256xf32> to vector<1x256xf32>
    %6 = vector.shape_cast %5 : vector<1x256xf32> to vector<1x1x256xf32>
    %c0_3 = arith.constant 0 : index
    %c0_4 = arith.constant 0 : index
    %c0_5 = arith.constant 0 : index
    %7 = vector.load %arg3[%c0_3, %c0_4, %c0_5] : memref<1x1x256xf32, #tpu.memory_space<vmem>>, vector<1x1x256xf32>
    %8 = arith.addf %7, %6 : vector<1x1x256xf32>
    %c0_6 = arith.constant 0 : index
    %c0_7 = arith.constant 0 : index
    %c0_8 = arith.constant 0 : index
    %9 = vector.load %arg3[%c0_6, %c0_7, %c0_8] : memref<1x1x256xf32, #tpu.memory_space<vmem>>, vector<1x1x256xf32>
    tpu.vector_store %arg3[%c0_6, %c0_7, %c0_8], %8 {strides = array<i32>} : memref<1x1x256xf32, #tpu.memory_space<vmem>>, vector<1x1x256xf32>,
    %c0_i32_9 = arith.constant 0 : i32
    %10 = arith.cmpi eq, %arg1, %c0_i32_9 : i32
    %11 = arith.extui %10 : i1 to i32
    %c0_i32_10 = arith.constant 0 : i32
    %12 = arith.cmpi ne, %11, %c0_i32_10 : i32
    scf.if %12 {
      %c0_11 = arith.constant 0 : index
      %c0_12 = arith.constant 0 : index
      %c0_13 = arith.constant 0 : index
      %13 = vector.load %arg3[%c0_11, %c0_12, %c0_13] : memref<1x1x256xf32, #tpu.memory_space<vmem>>, vector<1x1x256xf32>
      %cst_14 = arith.constant dense<0xFF800000> : vector<1x1xf32>
      %14 = vector.multi_reduction <maximumf>, %13, %cst_14 [2] : vector<1x1x256xf32> to vector<1x1xf32>
      %15 = vector.shape_cast %14 : vector<1x1xf32> to vector<1x1x1xf32>
      %16 = tpu.reciprocal %15 : vector<1x1x1xf32> -> vector<1x1x1xf32>
      %17 = vector.broadcast %16 : vector<1x1x1xf32> to vector<1x1x256xf32>
      %18 = arith.mulf %13, %17 : vector<1x1x256xf32>
      %c0_15 = arith.constant 0 : index
      %c0_16 = arith.constant 0 : index
      %c0_17 = arith.constant 0 : index
      %19 = vector.load %arg3[%c0_15, %c0_16, %c0_17] : memref<1x1x256xf32, #tpu.memory_space<vmem>>, vector<1x1x256xf32>
      tpu.vector_store %arg3[%c0_15, %c0_16, %c0_17], %18 {strides = array<i32>} : memref<1x1x256xf32, #tpu.memory_space<vmem>>, vector<1x1x256xf32>,
    } else {
    }
    return
  }
  func.func @transform_0(%arg0: i32, %arg1: i32) -> (i32, i32, i32) {
    %c0_i32 = arith.constant 0 : i32
    %c0_i32_0 = arith.constant 0 : i32
    return %arg0, %arg1, %c0_i32 : i32, i32, i32
  }
  func.func @transform_1(%arg0: i32, %arg1: i32) -> (i32, i32, i32) {
    %c0_i32 = arith.constant 0 : i32
    %c0_i32_0 = arith.constant 0 : i32
    %c0_i32_1 = arith.constant 0 : i32
    return %arg0, %c0_i32, %c0_i32_0 : i32, i32, i32
  }
}

</mosaic_0001>

<llo_original>
// kernel: tpu_custom_call.1
$region0: #{tpu_custom_call.1}
  #allocation0 [shape = 'u32[]', space=smem, size = 0x4, offset = 0x4, fixed_abs, tag = 'smem constant byte address 0x4 - core index']
  #allocation1 [shape = 'u32[144,128]{1,0:T(1,128)}', space=vmem, size = 0x12000, scoped, tag = 'internal scratch']
  %s0 = inlined_call_operand.hbm [shape: f32[2,4,256], index: 0, kind: input, shape index: {}]
  %s1 = inlined_call_operand.hbm [shape: f32[2,1,256], index: 1, kind: output, shape index: {}]
  %s2 = sld [smem:[#allocation0]]
  $region49: #{tpu_custom_call.1} parent=0
    _
  %s4 = ssub.s32 1, %s2
  %s5 = scalar_select 0, %s4, %s2
  $region1: #{tpu_custom_call.1} parent=0
    #allocation2 [shape = 'u8[8192]{0}', space=vmem, size = 0x2000, scoped, tag = 'input window, operand 0']
    #allocation3 [shape = 's32[2]{0}', space=sflag, size = 0x8, scoped, tag = 'scoped memory for tpu_custom_call.1']
    #allocation4 [shape = 's32[2]{0}', space=sflag, size = 0x8, scoped, tag = 'scoped memory for tpu_custom_call.1']
    #allocation5 [shape = 'u8[2048]{0}', space=vmem, size = 0x800, scoped, tag = 'output window, operand 0']
    %6 = vsyncpa [#allocation3], 0
    %s7 = scalar_lea.sflag [#allocation3], 1
    %8 = vsyncpa %s7, 0
    %9 = vsyncpa [#allocation4], 0
    %s10 = scalar_lea.sflag [#allocation4], 1
    %11 = vsyncpa %s10, 0
    loop: start=0, step=1, limit=4
    $region2: #{tpu_custom_call.1} parent=1 // loop_pre_header
      _
    $region3: #{tpu_custom_call.1} parent=1 // loop_header
      %s13 = sphi 0, %s17
      %p14 = scmp.ge.s32.totalorder %s13, 4
      %s20 = sphi 0, %s32
      %s21 = sphi 0, %s28
      %s22 = sphi 0, %s20
      %s23 = sphi 0, %s21
      %s24 = sphi 0, %s22
      %s25 = sphi 0, %s23
      %s37 = sphi 0, %s39
      %s40 = sphi 0, %s37
      %s41 = sphi 0, %s40
      %s57 = sphi 0, %s41
      %s63 = sphi 0, %s65
      %s66 = sphi 0, %s63
      %s67 = sphi 0, %s66
      %s83 = sphi 0, %s67
    $region4: #{tpu_custom_call.1} parent=1 // loop_header_branch
      %16 = sbr.rel (%p14) target = $region8
    $region5: #{tpu_custom_call.1} parent=1 // loop_body
      %s18 = ssub.s32 %s13, 1
      %s19 = ssub.s32 %s13, 2
      %s26 = sadd.s32 1, %s21
      %p27 = scmp.ge.s32.totalorder %s26, 1
      %s28 = scalar_select %p27, 0, %s26
      %s29 = sadd.s32 1, %s20
      %s30 = scalar_select %p27, %s29, %s20
      %p31 = scmp.ge.s32.totalorder %s30, 2
      %s32 = scalar_select %p31, 0, %s30
      %s33 = ssub.s32 %s20, %s32
      %s34 = ssub.s32 %s21, %s28
      %s35 = sor.u32 %s33, %s34
      %p36 = scmp.eq.s32.totalorder %s35, 0
      %s38 = sadd.s32 %s37, 1
      %s39 = scalar_select %p36, %s37, %s38
      %p42 = pneg %p36
      %p43 = scmp.eq.s32.totalorder %s13, 1
      %p44 = por %p42, %p43
      %p45 = scmp.ne.s32.totalorder %s37, %s40
      %p46 = scmp.eq.s32.totalorder %s13, 0
      %p47 = por %p45, %p46
      %p48 = scmp.ne.s32.totalorder %s37, %s40
      %p49 = scmp.eq.s32.totalorder %s18, 1
      %p50 = por %p48, %p49
      %p51 = scmp.ne.s32.totalorder %s40, %s41
      %p52 = scmp.eq.s32.totalorder %s18, 0
      %p53 = por %p51, %p52
      %p54 = scmp.ne.s32.totalorder %s40, %s41
      %p55 = scmp.eq.s32.totalorder %s19, 1
      %p56 = por %p54, %p55
      %p58 = scmp.ne.s32.totalorder %s41, %s57
      %p59 = scmp.eq.s32.totalorder %s19, 0
      %p60 = por %p58, %p59
      %s61 = ssub.s32 %s20, %s32
      %p62 = scmp.eq.s32.totalorder %s61, 0
      %s64 = sadd.s32 %s63, 1
      %s65 = scalar_select %p62, %s63, %s64
      %p68 = pneg %p62
      %p69 = scmp.eq.s32.totalorder %s13, 1
      %p70 = por %p68, %p69
      %p71 = scmp.ne.s32.totalorder %s63, %s66
      %p72 = scmp.eq.s32.totalorder %s13, 0
      %p73 = por %p71, %p72
      %p74 = scmp.ne.s32.totalorder %s63, %s66
      %p75 = scmp.eq.s32.totalorder %s18, 1
      %p76 = por %p74, %p75
      %p77 = scmp.ne.s32.totalorder %s66, %s67
      %p78 = scmp.eq.s32.totalorder %s18, 0
      %p79 = por %p77, %p78
      %p80 = scmp.ne.s32.totalorder %s66, %s67
      %p81 = scmp.eq.s32.totalorder %s19, 1
      %p82 = por %p80, %p81
      %p84 = scmp.ne.s32.totalorder %s67, %s83
      %p85 = scmp.eq.s32.totalorder %s19, 0
      %p86 = por %p84, %p85
      %p87 = scmp.le.s32.totalorder 1, %s13
      %p88 = scmp.lt.s32.totalorder %s13, 3
      %p89 = pnand %p87, %p88
      %p90 = pneg %p89
      // Predicated region
      $region9: #{tpu_custom_call.1} parent=5 // pred_check
        _
      $region10: #{tpu_custom_call.1} parent=5 // pred_check_branch
        %92 = sbr.rel (%p89) target = $region12
      $region11: #{tpu_custom_call.1} parent=5 // pred_region
        %s93 = ssub.s32 %s13, 1
      $region12: #{tpu_custom_call.1} parent=5 // pred_fallthru
        _
      %p94 = scmp.lt.s32.totalorder %s13, 2
      // Predicated region
      $region13: #{tpu_custom_call.1} parent=5 // pred_check
        %p95 = pneg %p94
      $region14: #{tpu_custom_call.1} parent=5 // pred_check_branch
        %97 = sbr.rel (%p95) target = $region16
      $region15: #{tpu_custom_call.1} parent=5 // pred_region
        // Predicated region
        $region17: #{tpu_custom_call.1} parent=15 // pred_check
          %p98 = pneg %p47
        $region18: #{tpu_custom_call.1} parent=15 // pred_check_branch
          %100 = sbr.rel (%p98) target = $region20
        $region19: #{tpu_custom_call.1} parent=15 // pred_region
          %s101 = sand.u32 %s37, 1
          %s102 = scalar_lea.sflag [#allocation3], %s101
          %s103 = sand.u32 %s37, 1
          %s104 = smul.addr %s103, 8
          %s105 = scalar_lea.vmem [#allocation2], %s104
          %s107 = ssub.s32 128, 128
          %108 = vsyncadd %s102, %s107
          %s109 = smul.addr %s21, 2
          %s110 = smul.addr %s20, 2
          %s111 = sadd.s32 %s109, %s110
          %s112 = smul.addr %s111, 64
          %s113 = scalar_lea.hbm %s0, %s112
          %s115 = sshll.u32 %s105, 4
          %s116 = int_to_ptr.vmem [resolvable:$true] %s115
          %118 = dma.hbm_to_vmem [thread:$0]  %s113, 128, %s116, %s102
        $region20: #{tpu_custom_call.1} parent=15 // pred_fallthru
          _
      $region16: #{tpu_custom_call.1} parent=5 // pred_fallthru
        _
      %p119 = scmp.le.s32.totalorder 1, %s13
      %p120 = scmp.lt.s32.totalorder %s13, 3
      %p121 = pnand %p119, %p120
      %p122 = pneg %p121
      // Predicated region
      $region21: #{tpu_custom_call.1} parent=5 // pred_check
        _
      $region22: #{tpu_custom_call.1} parent=5 // pred_check_branch
        %124 = sbr.rel (%p121) target = $region24
      $region23: #{tpu_custom_call.1} parent=5 // pred_region
        %s125 = ssub.s32 %s13, 1
        %s126 = sand.u32 %s40, 1
        %s127 = scalar_lea.sflag [#allocation3], %s126
        %s128 = sand.u32 %s40, 1
        %s129 = smul.addr %s128, 8
        %s130 = scalar_lea.vmem [#allocation2], %s129
        // Predicated region
        $region25: #{tpu_custom_call.1} parent=23 // pred_check
          %p131 = pneg %p53
        $region26: #{tpu_custom_call.1} parent=23 // pred_check_branch
          %133 = sbr.rel (%p131) target = $region28
        $region27: #{tpu_custom_call.1} parent=23 // pred_region
          %134 = dma.done %s127, 128
        $region28: #{tpu_custom_call.1} parent=23 // pred_fallthru
          _
        %s135 = sand.u32 %s40, 1
        %s136 = scalar_lea.sflag [#allocation3], %s135
        %s137 = sand.u32 %s40, 1
        %s138 = smul.addr %s137, 8
        %s139 = scalar_lea.vmem [#allocation2], %s138
        %p140 = pneg %p53
        %p141 = pneg %p50
        %p142 = pneg %p79
        %p143 = pneg %p76
        %s144 = sand.u32 %s66, 1
        %s145 = scalar_lea.sflag [#allocation4], %s144
        %s146 = sand.u32 %s66, 1
        %s147 = smul.addr %s146, 2
        %s148 = scalar_lea.vmem [#allocation5], %s147
        %p149 = scmp.eq.s32.totalorder %s23, 0
        // Predicated region
        $region29: #{tpu_custom_call.1} parent=23 // pred_check
          %p150 = pneg %p149
        $region30: #{tpu_custom_call.1} parent=23 // pred_check_branch
          %152 = sbr.rel (%p150) target = $region32
        $region31: #{tpu_custom_call.1} parent=23 // pred_region
          %v153 = vlaneseq
          %vm154 = vcmp.ge.s32.totalorder %v153, 0
          %vm155 = vcmp.lt.s32.totalorder %v153, 256
          %vm156 = vmand %vm154, %vm155
          %157 = vst.msk [vmem:[%s148] sm:$0x3] %vm156, 0.0
        $region32: #{tpu_custom_call.1} parent=23 // pred_fallthru
          _
        %v158 = vld [vmem:[%s130] sm:$0xff]
        %v159 = vmul.f32 %v158, %v158
        %v161 = vcombine.high %v159, %v159
        %vm163 = vcmask 1043456
        %v164 = vsel %vm163, %v159, 0.0
        %v165 = vrot.slane %v164, 4
        %v166 = vadd.f32 %v164, %v165
        %v167 = vrot.slane %v166, 2
        %v168 = vadd.f32 %v166, %v167
        %v169 = vrot.slane %v168, 1
        %v170 = vadd.f32 %v168, %v169
        %v171 = vsel %vm163, %v161, 0.0
        %v172 = vrot.slane %v171, 4
        %v173 = vadd.f32 %v171, %v172
        %v174 = vrot.slane %v173, 2
        %v175 = vadd.f32 %v173, %v174
        %v176 = vrot.slane %v175, 1
        %v177 = vadd.f32 %v175, %v176
        %v178 = vld [vmem:[%s148] sm:$0x3]
        %v181 = vcombine.low %v170, %v177
        %v183 = vunpack.c.l.s4 1966171168
        %v184 = vunpack.c.0.s8 %v183
        %v185 = vlaneseq
        %v186 = vshrl.u32 %v185, 7
        %v187 = vsub.s32 %v184, %v186
        %v188 = vrot.slane %v181, %v187
        %v190 = vunpack.c.l.s4 1966171168
        %v191 = vunpack.c.0.s8 %v190
        %v192 = vlaneseq
        %v193 = vshrl.u32 %v192, 7
        %v194 = vsub.s32 %v191, %v193
        %v195 = vrot.slane %v188, %v194
        %v197 = vadd.f32 %v178, %v195
        %v198 = vlaneseq
        %vm199 = vcmp.ge.s32.totalorder %v198, 0
        %vm200 = vcmp.lt.s32.totalorder %v198, 256
        %vm201 = vmand %vm199, %vm200
        %202 = vst.msk [vmem:[%s148] sm:$0x3] %vm201, %v197
        // Predicated region
        $region33: #{tpu_custom_call.1} parent=23 // pred_check
          %p203 = pneg %p149
        $region34: #{tpu_custom_call.1} parent=23 // pred_check_branch
          %205 = sbr.rel (%p203) target = $region36
        $region35: #{tpu_custom_call.1} parent=23 // pred_region
          %v206 = vld [vmem:[%s148] sm:$0x3]
          %v208 = vlaneseq
          %v209 = vshrl.u32 %v208, 7
          %v210 = vsub.s32 0, %v209
          %v211 = vrot.slane %v206, %v210
          %v212 = vlaneseq
          %v213 = vshrl.u32 %v212, 7
          %v214 = vsub.s32 1, %v213
          %v215 = vrot.slane %v206, %v214
          %vm218 = vcmask 1040384
          %v219 = vsel %vm218, %v211, -inf
          %v220 = vsel %vm218, %v215, -inf
          %v221 = vmax.f32 %v219, %v220
          %222 = vmax.xlane.f32.xlu0 %v221
          %v223 = vpop.xlane.xlu0 %222
          %v224 = vrcp.pop %v223
          %v226 = vlaneseq
          %v227 = vshrl.u32 %v226, 7
          %v228 = vsub.s32 0, %v227
          %v229 = vrot.slane %v224, %v228
          %v231 = vmul.f32 %v206, %v229
          %232 = vst.msk [vmem:[%s148] sm:$0x3] %vm201, %v231
        $region36: #{tpu_custom_call.1} parent=23 // pred_fallthru
          _
        %s233 = sand.u32 %s66, 1
        %s234 = scalar_lea.sflag [#allocation4], %s233
        %s235 = sand.u32 %s66, 1
        %s236 = smul.addr %s235, 2
        %s237 = scalar_lea.vmem [#allocation5], %s236
        // Predicated region
        $region37: #{tpu_custom_call.1} parent=23 // pred_check
          %p238 = pneg %p76
        $region38: #{tpu_custom_call.1} parent=23 // pred_check_branch
          %240 = sbr.rel (%p238) target = $region40
        $region39: #{tpu_custom_call.1} parent=23 // pred_region
          %s242 = ssub.s32 32, 32
          %243 = vsyncadd %s234, %s242
          %s244 = smul.addr %s22, 2
          %s245 = smul.addr %s244, 16
          %s246 = scalar_lea.hbm %s1, %s245
          %s248 = sshll.u32 %s237, 4
          %s249 = int_to_ptr.vmem [resolvable:$true] %s248
          %251 = dma.vmem_to_hbm [thread:$0]  %s249, 32, %s246, %s234
        $region40: #{tpu_custom_call.1} parent=23 // pred_fallthru
          _
      $region24: #{tpu_custom_call.1} parent=5 // pred_fallthru
        _
      %p252 = scmp.le.s32.totalorder 2, %s13
      // Predicated region
      $region41: #{tpu_custom_call.1} parent=5 // pred_check
        %p253 = pneg %p252
      $region42: #{tpu_custom_call.1} parent=5 // pred_check_branch
        %255 = sbr.rel (%p253) target = $region44
      $region43: #{tpu_custom_call.1} parent=5 // pred_region
        %s256 = ssub.s32 %s13, 2
        // Predicated region
        $region45: #{tpu_custom_call.1} parent=43 // pred_check
          %p257 = pneg %p82
        $region46: #{tpu_custom_call.1} parent=43 // pred_check_branch
          %259 = sbr.rel (%p257) target = $region48
        $region47: #{tpu_custom_call.1} parent=43 // pred_region
          %s260 = sand.u32 %s67, 1
          %s261 = scalar_lea.sflag [#allocation4], %s260
          %s262 = sand.u32 %s67, 1
          %s263 = smul.addr %s262, 2
          %s264 = scalar_lea.vmem [#allocation5], %s263
          %265 = dma.done %s261, 32
        $region48: #{tpu_custom_call.1} parent=43 // pred_fallthru
          _
      $region44: #{tpu_custom_call.1} parent=5 // pred_fallthru
        _
    $region6: #{tpu_custom_call.1} parent=1 // loop_footer
      %s17 = sadd.s32 1, %s13
    $region7: #{tpu_custom_call.1} parent=1 // loop_footer_branch
      %12 = sbr.rel target = $region3
    $region8: #{tpu_custom_call.1} parent=1 // loop_exit
      _
    %266 = vsyncpa [#allocation3], 1
    %s267 = scalar_lea.sflag [#allocation3], 1
    %268 = vsyncpa %s267, 1
    %269 = vsyncpa [#allocation4], 1
    %s270 = scalar_lea.sflag [#allocation4], 1
    %271 = vsyncpa %s270, 1

</llo_original>
